<compile_context>
chip_gen: v7x
topology: tpu7x:2x2x1
jax: 0.10.0
libtpu: 0.0.40
codegen_flags: <defaults>
</compile_context>

<pallas_src>
import jax
import jax.numpy as jnp
from jax.experimental import pallas as pl
from jax.experimental.pallas import tpu as pltpu

# Below this many bytes a pallas_call is pure overhead -> metadata path.
_MIN_KERNEL_BYTES = 1 << 20
# A few chunked DMAs let multiple DMA engines / both v7x TCs' queues share
# the copy; more than ~4 adds descriptor overhead with no BW to gain.
_MAX_DMA_CHUNKS = 4


def _row_splits(rows: int, max_chunks: int):
    """Static (start, size) row ranges covering [0, rows), roughly equal."""
    n_chunks = max(1, min(max_chunks, rows))
    base, rem = divmod(rows, n_chunks)
    splits, start = [], 0
    for k in range(n_chunks):
        size = base + (1 if k < rem else 0)
        if size == 0:
            continue
        splits.append((start, size))
        start += size
    return tuple(splits)


def _make_dma_copy_kernel(row_splits):
    """Kernel factory: HBM->HBM DMA copy of a 2-D slab, chunked along rows.

    All chunk boundaries are static Python ints, so every DMA descriptor is
    fully static; the TensorCore only issues/waits on the DMAs.
    """

    def kernel(x_hbm, o_hbm, sems):
        copies = []
        for k, (start, size) in enumerate(row_splits):
            cp = pltpu.make_async_copy(
                x_hbm.at[pl.ds(start, size), :],
                o_hbm.at[pl.ds(start, size), :],
                sems.at[k],
            )
            cp.start()
            copies.append(cp)
        # Overlap all chunk DMAs, then wait for completion.
        for cp in copies:
            cp.wait()

    return kernel


def _dma_copy_2d(x2: jax.Array) -> jax.Array:
    """Direct HBM->HBM DMA copy of a contiguous row-major 2-D slab."""
    m, n = x2.shape
    splits = _row_splits(m, _MAX_DMA_CHUNKS)
    nbytes = x2.size * jnp.dtype(x2.dtype).itemsize
    return pl.pallas_call(
        _make_dma_copy_kernel(splits),
        out_shape=jax.ShapeDtypeStruct((m, n), x2.dtype),
        in_specs=[pl.BlockSpec(memory_space=pl.ANY)],
        out_specs=pl.BlockSpec(memory_space=pl.ANY),
        scratch_shapes=[pltpu.SemaphoreType.DMA((len(splits),))],
        cost_estimate=pl.CostEstimate(
            flops=0, transcendentals=0, bytes_accessed=2 * nbytes
        ),
    )(x2)


def _normalize_dim(dim: int, ndim: int) -> int:
    # torch allows dim in [-(ndim+1), ndim]
    if dim < 0:
        dim = dim + ndim + 1
    if not (0 <= dim <= ndim):
        raise ValueError(f"dim {dim} out of range for {ndim}-D input")
    return dim


def unsqueeze(x: jax.Array, dim: int, *, materialize_with_pallas: bool = False) -> jax.Array:
    """Pallas/JAX equivalent of torch.Tensor.unsqueeze(dim).

    Default path is metadata-only (no kernel, no HBM traffic). Set
    materialize_with_pallas=True to force an explicit Pallas HBM->HBM DMA
    copy of the data (large inputs only; tiny inputs still take the
    metadata path since a kernel call would be pure overhead).
    """
    d = _normalize_dim(dim, x.ndim)
    out_shape = x.shape[:d] + (1,) + x.shape[d:]

    nbytes = x.size * jnp.dtype(x.dtype).itemsize
    if (
        not materialize_with_pallas
        or x.ndim == 0
        or x.size == 0
        or nbytes < _MIN_KERNEL_BYTES
    ):
        # Recommended path: unsqueeze is a pure metadata change.
        return jnp.expand_dims(x, d)

    # View as (rows, last_dim): row-major contiguous -> metadata-only reshape.
    # The DMA is a contiguous byte copy, so `dim` never affects the kernel.
    c = x.shape[-1]
    m = x.size // c
    x2 = x.reshape(m, c)
    y2 = _dma_copy_2d(x2)
    # Inserting a size-1 axis into a contiguous buffer is metadata-only.
    return y2.reshape(out_shape)


class Unsqueesze:
    """Drop-in analogue of the PyTorch module."""

    def __init__(self, dim: int, *, materialize_with_pallas: bool = False):
        self.dim = dim
        self.materialize_with_pallas = materialize_with_pallas

    def __call__(self, x: jax.Array) -> jax.Array:
        return unsqueeze(x, self.dim, materialize_with_pallas=self.materialize_with_pallas)


if __name__ == "__main__":
    key = jax.random.PRNGKey(0)
    k1, k2 = jax.random.split(key)

    # Small (batch, seq, hidden) tensor like the original demo -> metadata path.
    x_small = jax.random.normal(k1, (2, 8, 32), dtype=jnp.float32)
    # Larger tensor (2 MiB) that exercises the chunked HBM->HBM DMA kernel.
    x_big = jax.random.normal(k2, (4, 256, 512), dtype=jnp.float32)

    for x in (x_small, x_big):
        for dim in (0, 1, -1, x.ndim):
            ref = jnp.expand_dims(x, dim)

            # Zero-cost metadata path (the production default).
            y_meta = Unsqueesze(dim)(x)
            # Pallas DMA path (kernel runs for x_big; tiny x_small falls back).
            y_pallas = Unsqueesze(dim, materialize_with_pallas=True)(x)
            y_meta, y_pallas = jax.block_until_ready((y_meta, y_pallas))

            assert y_meta.shape == ref.shape, (y_meta.shape, ref.shape)
            assert y_pallas.shape == ref.shape, (y_pallas.shape, ref.shape)
            assert y_meta.dtype == ref.dtype == y_pallas.dtype
            assert bool(jnp.array_equal(y_meta, ref))
            assert bool(jnp.array_equal(y_pallas, ref))

    print("KERNEL_OK")
</pallas_src>

<mosaic_0001>
module attributes {stable_mosaic.version = 11 : i64} {
  func.func @kernel(%arg0: memref<1024x512xf32, #tpu.memory_space<any>>, %arg1: memref<1024x512xf32, #tpu.memory_space<any>>, %arg2: memref<4x!tpu.dma_semaphore, #tpu.memory_space<semaphore_mem>>) attributes {dimension_semantics = [], scalar_prefetch = 0 : i64, scratch_operands = 1 : i64, tpu.core_type = #tpu.core_type<tc>} {
    %c0_i32 = arith.constant 0 : i32
    %c0_i32_0 = arith.constant 0 : i32
    %c0_i32_1 = arith.constant 0 : i32
    %0 = tpu.memref_slice %arg0[%c0_i32_0, %c0_i32_1] : memref<1024x512xf32, #tpu.memory_space<any>> -> memref<256x512xf32, #tpu.memory_space<any>>
    %c0_i32_2 = arith.constant 0 : i32
    %c0_i32_3 = arith.constant 0 : i32
    %1 = tpu.memref_slice %arg1[%c0_i32_2, %c0_i32_3] : memref<1024x512xf32, #tpu.memory_space<any>> -> memref<256x512xf32, #tpu.memory_space<any>>
    %2 = tpu.memref_slice %arg2[%c0_i32] : memref<4x!tpu.dma_semaphore, #tpu.memory_space<semaphore_mem>> -> memref<1x!tpu.dma_semaphore, #tpu.memory_space<semaphore_mem>>
    %3 = tpu.memref_squeeze %2 : memref<1x!tpu.dma_semaphore, #tpu.memory_space<semaphore_mem>> -> memref<!tpu.dma_semaphore, #tpu.memory_space<semaphore_mem>>
    tpu.enqueue_dma source(%0 : memref<256x512xf32, #tpu.memory_space<any>>) target(%1 : memref<256x512xf32, #tpu.memory_space<any>>) target_semaphore(%3 : memref<!tpu.dma_semaphore, #tpu.memory_space<semaphore_mem>>)
    %c1_i32 = arith.constant 1 : i32
    %c256_i32 = arith.constant 256 : i32
    %c0_i32_4 = arith.constant 0 : i32
    %4 = tpu.memref_slice %arg0[%c256_i32, %c0_i32_4] : memref<1024x512xf32, #tpu.memory_space<any>> -> memref<256x512xf32, #tpu.memory_space<any>>
    %c256_i32_5 = arith.constant 256 : i32
    %c0_i32_6 = arith.constant 0 : i32
    %5 = tpu.memref_slice %arg1[%c256_i32_5, %c0_i32_6] : memref<1024x512xf32, #tpu.memory_space<any>> -> memref<256x512xf32, #tpu.memory_space<any>>
    %6 = tpu.memref_slice %arg2[%c1_i32] : memref<4x!tpu.dma_semaphore, #tpu.memory_space<semaphore_mem>> -> memref<1x!tpu.dma_semaphore, #tpu.memory_space<semaphore_mem>>
    %7 = tpu.memref_squeeze %6 : memref<1x!tpu.dma_semaphore, #tpu.memory_space<semaphore_mem>> -> memref<!tpu.dma_semaphore, #tpu.memory_space<semaphore_mem>>
    tpu.enqueue_dma source(%4 : memref<256x512xf32, #tpu.memory_space<any>>) target(%5 : memref<256x512xf32, #tpu.memory_space<any>>) target_semaphore(%7 : memref<!tpu.dma_semaphore, #tpu.memory_space<semaphore_mem>>)
    %c2_i32 = arith.constant 2 : i32
    %c512_i32 = arith.constant 512 : i32
    %c0_i32_7 = arith.constant 0 : i32
    %8 = tpu.memref_slice %arg0[%c512_i32, %c0_i32_7] : memref<1024x512xf32, #tpu.memory_space<any>> -> memref<256x512xf32, #tpu.memory_space<any>>
    %c512_i32_8 = arith.constant 512 : i32
    %c0_i32_9 = arith.constant 0 : i32
    %9 = tpu.memref_slice %arg1[%c512_i32_8, %c0_i32_9] : memref<1024x512xf32, #tpu.memory_space<any>> -> memref<256x512xf32, #tpu.memory_space<any>>
    %10 = tpu.memref_slice %arg2[%c2_i32] : memref<4x!tpu.dma_semaphore, #tpu.memory_space<semaphore_mem>> -> memref<1x!tpu.dma_semaphore, #tpu.memory_space<semaphore_mem>>
    %11 = tpu.memref_squeeze %10 : memref<1x!tpu.dma_semaphore, #tpu.memory_space<semaphore_mem>> -> memref<!tpu.dma_semaphore, #tpu.memory_space<semaphore_mem>>
    tpu.enqueue_dma source(%8 : memref<256x512xf32, #tpu.memory_space<any>>) target(%9 : memref<256x512xf32, #tpu.memory_space<any>>) target_semaphore(%11 : memref<!tpu.dma_semaphore, #tpu.memory_space<semaphore_mem>>)
    %c3_i32 = arith.constant 3 : i32
    %c768_i32 = arith.constant 768 : i32
    %c0_i32_10 = arith.constant 0 : i32
    %12 = tpu.memref_slice %arg0[%c768_i32, %c0_i32_10] : memref<1024x512xf32, #tpu.memory_space<any>> -> memref<256x512xf32, #tpu.memory_space<any>>
    %c768_i32_11 = arith.constant 768 : i32
    %c0_i32_12 = arith.constant 0 : i32
    %13 = tpu.memref_slice %arg1[%c768_i32_11, %c0_i32_12] : memref<1024x512xf32, #tpu.memory_space<any>> -> memref<256x512xf32, #tpu.memory_space<any>>
    %14 = tpu.memref_slice %arg2[%c3_i32] : memref<4x!tpu.dma_semaphore, #tpu.memory_space<semaphore_mem>> -> memref<1x!tpu.dma_semaphore, #tpu.memory_space<semaphore_mem>>
    %15 = tpu.memref_squeeze %14 : memref<1x!tpu.dma_semaphore, #tpu.memory_space<semaphore_mem>> -> memref<!tpu.dma_semaphore, #tpu.memory_space<semaphore_mem>>
    tpu.enqueue_dma source(%12 : memref<256x512xf32, #tpu.memory_space<any>>) target(%13 : memref<256x512xf32, #tpu.memory_space<any>>) target_semaphore(%15 : memref<!tpu.dma_semaphore, #tpu.memory_space<semaphore_mem>>)
    %c0_i32_13 = arith.constant 0 : i32
    %c0_i32_14 = arith.constant 0 : i32
    %c0_i32_15 = arith.constant 0 : i32
    %16 = tpu.memref_slice %arg0[%c0_i32_14, %c0_i32_15] : memref<1024x512xf32, #tpu.memory_space<any>> -> memref<256x512xf32, #tpu.memory_space<any>>
    %c0_i32_16 = arith.constant 0 : i32
    %c0_i32_17 = arith.constant 0 : i32
    %17 = tpu.memref_slice %arg1[%c0_i32_16, %c0_i32_17] : memref<1024x512xf32, #tpu.memory_space<any>> -> memref<256x512xf32, #tpu.memory_space<any>>
    %18 = tpu.memref_slice %arg2[%c0_i32_13] : memref<4x!tpu.dma_semaphore, #tpu.memory_space<semaphore_mem>> -> memref<1x!tpu.dma_semaphore, #tpu.memory_space<semaphore_mem>>
    %19 = tpu.memref_squeeze %18 : memref<1x!tpu.dma_semaphore, #tpu.memory_space<semaphore_mem>> -> memref<!tpu.dma_semaphore, #tpu.memory_space<semaphore_mem>>
    tpu.wait_dma2 semaphore(%19 : memref<!tpu.dma_semaphore, #tpu.memory_space<semaphore_mem>>) src(%16 : memref<256x512xf32, #tpu.memory_space<any>>) dst(%17 : memref<256x512xf32, #tpu.memory_space<any>>)
    %c1_i32_18 = arith.constant 1 : i32
    %c256_i32_19 = arith.constant 256 : i32
    %c0_i32_20 = arith.constant 0 : i32
    %20 = tpu.memref_slice %arg0[%c256_i32_19, %c0_i32_20] : memref<1024x512xf32, #tpu.memory_space<any>> -> memref<256x512xf32, #tpu.memory_space<any>>
    %c256_i32_21 = arith.constant 256 : i32
    %c0_i32_22 = arith.constant 0 : i32
    %21 = tpu.memref_slice %arg1[%c256_i32_21, %c0_i32_22] : memref<1024x512xf32, #tpu.memory_space<any>> -> memref<256x512xf32, #tpu.memory_space<any>>
    %22 = tpu.memref_slice %arg2[%c1_i32_18] : memref<4x!tpu.dma_semaphore, #tpu.memory_space<semaphore_mem>> -> memref<1x!tpu.dma_semaphore, #tpu.memory_space<semaphore_mem>>
    %23 = tpu.memref_squeeze %22 : memref<1x!tpu.dma_semaphore, #tpu.memory_space<semaphore_mem>> -> memref<!tpu.dma_semaphore, #tpu.memory_space<semaphore_mem>>
    tpu.wait_dma2 semaphore(%23 : memref<!tpu.dma_semaphore, #tpu.memory_space<semaphore_mem>>) src(%20 : memref<256x512xf32, #tpu.memory_space<any>>) dst(%21 : memref<256x512xf32, #tpu.memory_space<any>>)
    %c2_i32_23 = arith.constant 2 : i32
    %c512_i32_24 = arith.constant 512 : i32
    %c0_i32_25 = arith.constant 0 : i32
    %24 = tpu.memref_slice %arg0[%c512_i32_24, %c0_i32_25] : memref<1024x512xf32, #tpu.memory_space<any>> -> memref<256x512xf32, #tpu.memory_space<any>>
    %c512_i32_26 = arith.constant 512 : i32
    %c0_i32_27 = arith.constant 0 : i32
    %25 = tpu.memref_slice %arg1[%c512_i32_26, %c0_i32_27] : memref<1024x512xf32, #tpu.memory_space<any>> -> memref<256x512xf32, #tpu.memory_space<any>>
    %26 = tpu.memref_slice %arg2[%c2_i32_23] : memref<4x!tpu.dma_semaphore, #tpu.memory_space<semaphore_mem>> -> memref<1x!tpu.dma_semaphore, #tpu.memory_space<semaphore_mem>>
    %27 = tpu.memref_squeeze %26 : memref<1x!tpu.dma_semaphore, #tpu.memory_space<semaphore_mem>> -> memref<!tpu.dma_semaphore, #tpu.memory_space<semaphore_mem>>
    tpu.wait_dma2 semaphore(%27 : memref<!tpu.dma_semaphore, #tpu.memory_space<semaphore_mem>>) src(%24 : memref<256x512xf32, #tpu.memory_space<any>>) dst(%25 : memref<256x512xf32, #tpu.memory_space<any>>)
    %c3_i32_28 = arith.constant 3 : i32
    %c768_i32_29 = arith.constant 768 : i32
    %c0_i32_30 = arith.constant 0 : i32
    %28 = tpu.memref_slice %arg0[%c768_i32_29, %c0_i32_30] : memref<1024x512xf32, #tpu.memory_space<any>> -> memref<256x512xf32, #tpu.memory_space<any>>
    %c768_i32_31 = arith.constant 768 : i32
    %c0_i32_32 = arith.constant 0 : i32
    %29 = tpu.memref_slice %arg1[%c768_i32_31, %c0_i32_32] : memref<1024x512xf32, #tpu.memory_space<any>> -> memref<256x512xf32, #tpu.memory_space<any>>
    %30 = tpu.memref_slice %arg2[%c3_i32_28] : memref<4x!tpu.dma_semaphore, #tpu.memory_space<semaphore_mem>> -> memref<1x!tpu.dma_semaphore, #tpu.memory_space<semaphore_mem>>
    %31 = tpu.memref_squeeze %30 : memref<1x!tpu.dma_semaphore, #tpu.memory_space<semaphore_mem>> -> memref<!tpu.dma_semaphore, #tpu.memory_space<semaphore_mem>>
    tpu.wait_dma2 semaphore(%31 : memref<!tpu.dma_semaphore, #tpu.memory_space<semaphore_mem>>) src(%28 : memref<256x512xf32, #tpu.memory_space<any>>) dst(%29 : memref<256x512xf32, #tpu.memory_space<any>>)
    return
  }
}

</mosaic_0001>

<llo_original>
// kernel: tpu_custom_call.1
$region0: #{tpu_custom_call.1}
  #allocation0 [shape = 'u32[]', space=smem, size = 0x4, offset = 0x4, fixed_abs, tag = 'smem constant byte address 0x4 - core index']
  #allocation1 [shape = 'u32[144,128]{1,0:T(1,128)}', space=vmem, size = 0x12000, scoped, tag = 'internal scratch']
  #allocation2 [shape = 's32[4]{0}', space=sflag, size = 0x10, scoped, tag = 'scratch operand']
  #allocation3 [shape = 's32[]', space=sflag, size = 0x4, offset = 0, fixed_abs, tag = 'sflag constant byte address 0x0 - dummy sync flag']
  #allocation4 [shape = 'u32[0]{0}', space=smem, size = 0, offset = 0, fixed_abs, tag = 'smem constant byte address 0x0 - null']
  #allocation5 [shape = 's32[]', space=sflag, size = 0x4, offset = 0, fixed_abs, tag = 'sflag constant byte address 0x0 - dummy sync flag']
  #allocation6 [shape = 'u32[0]{0}', space=smem, size = 0, offset = 0, fixed_abs, tag = 'smem constant byte address 0x0 - null']
  #allocation7 [shape = 's32[]', space=sflag, size = 0x4, offset = 0, fixed_abs, tag = 'sflag constant byte address 0x0 - dummy sync flag']
  #allocation8 [shape = 'u32[0]{0}', space=smem, size = 0, offset = 0, fixed_abs, tag = 'smem constant byte address 0x0 - null']
  #allocation9 [shape = 's32[]', space=sflag, size = 0x4, offset = 0, fixed_abs, tag = 'sflag constant byte address 0x0 - dummy sync flag']
  #allocation10 [shape = 'u32[0]{0}', space=smem, size = 0, offset = 0, fixed_abs, tag = 'smem constant byte address 0x0 - null']
  %s0 = inlined_call_operand.hbm [shape: f32[1024,512], index: 0, kind: input, shape index: {}]
  %s1 = inlined_call_operand.hbm [shape: f32[1024,512], index: 1, kind: output, shape index: {}]
  %s2 = sld [smem:[#allocation0]]
  $region2: #{tpu_custom_call.1} parent=0
    _
  %s4 = ssub.s32 1, %s2
  %s5 = scalar_select 0, %s4, %s2
  %s7 = sshll.u32 1, 14
  %s8 = sxor.u32 4294967295, %s7
  %s11 = sshll.u32 3, 24
  %s12 = sxor.u32 4294967295, %s11
  %s13 = sand.u32 0, %s12
  %s15 = sor.u32 %s13, 0
  %18 = dma.general %s0, 16384, %s1, [#allocation2], [#allocation3], [#allocation4], %s15, 0
  %s19 = scalar_lea.hbm %s0, 16384
  %s20 = scalar_lea.hbm %s1, 16384
  %s21 = scalar_lea.sflag [#allocation2], 1
  %s23 = sshll.u32 1, 14
  %s24 = sxor.u32 4294967295, %s23
  %s27 = sshll.u32 3, 24
  %s28 = sxor.u32 4294967295, %s27
  %s29 = sand.u32 0, %s28
  %s31 = sor.u32 %s29, 0
  %34 = dma.general %s19, 16384, %s20, %s21, [#allocation5], [#allocation6], %s31, 0
  %s35 = scalar_lea.hbm %s0, 32768
  %s36 = scalar_lea.hbm %s1, 32768
  %s37 = scalar_lea.sflag [#allocation2], 2
  %s39 = sshll.u32 1, 14
  %s40 = sxor.u32 4294967295, %s39
  %s43 = sshll.u32 3, 24
  %s44 = sxor.u32 4294967295, %s43
  %s45 = sand.u32 0, %s44
  %s47 = sor.u32 %s45, 0
  %50 = dma.general %s35, 16384, %s36, %s37, [#allocation7], [#allocation8], %s47, 0
  %s51 = scalar_lea.hbm %s0, 49152
  %s52 = scalar_lea.hbm %s1, 49152
  %s53 = scalar_lea.sflag [#allocation2], 3
  %s55 = sshll.u32 1, 14
  %s56 = sxor.u32 4294967295, %s55
  %s59 = sshll.u32 3, 24
  %s60 = sxor.u32 4294967295, %s59
  %s61 = sand.u32 0, %s60
  %s63 = sor.u32 %s61, 0
  %66 = dma.general %s51, 16384, %s52, %s53, [#allocation9], [#allocation10], %s63, 0
  %s67 = smul.u32 8, 32
  %s68 = smul.u32 %s67, 4
  %s69 = sshll.u32 %s68, 4
  %70 = dma.done [#allocation2], %s69
  %s71 = sshll.u32 %s68, 4
  %72 = dma.done %s21, %s71
  %s73 = sshll.u32 %s68, 4
  %74 = dma.done %s37, %s73
  %s75 = sshll.u32 %s68, 4
  %76 = dma.done %s53, %s75
  %77 = vsyncmov [#allocation2]
  %s78 = vpop.sfrf %77
  %p79 = scmp.eq.s32.totalorder %s78, 0
  %p80 = pneg %p79
  %82 = shalt.err (%p80)
  %s83 = scalar_lea.sflag [#allocation2], 1
  %84 = vsyncmov %s83
  %s85 = vpop.sfrf %84
  %p86 = scmp.eq.s32.totalorder %s85, 0
  %p87 = pneg %p86
  %89 = shalt.err (%p87)
  %s90 = scalar_lea.sflag [#allocation2], 2
  %91 = vsyncmov %s90
  %s92 = vpop.sfrf %91
  %p93 = scmp.eq.s32.totalorder %s92, 0
  %p94 = pneg %p93
  %96 = shalt.err (%p94)
  %s97 = scalar_lea.sflag [#allocation2], 3
  %98 = vsyncmov %s97
  %s99 = vpop.sfrf %98
  %p100 = scmp.eq.s32.totalorder %s99, 0
  %p101 = pneg %p100
  %103 = shalt.err (%p101)

</llo_original>
